<compile_context>
chip_gen: v5e
topology: v5e:2x2
jax: 0.10.0
libtpu: 0.0.40
codegen_flags: <defaults>
</compile_context>

<pallas_src>
import functools

import jax
import jax.numpy as jnp
from jax import lax
from jax.experimental import pallas as pl
from jax.experimental.pallas import tpu as pltpu

_LANES = 128
_ACC_ROWS = 128          # 128 x 128 x 4B = 64 KiB f32 accumulator (16 vregs)


def _tpu_kind() -> str:
    try:
        return jax.devices()[0].device_kind.lower()
    except Exception:  # pragma: no cover - defensive (CPU interpret, etc.)
        return ""


def _num_cores(kind: str) -> int:
    # Only v7x has 2 TensorCores per chip; elsewhere the core axis would just
    # add an extra sequential init/finalize/writeback.
    return 2 if ("v7" in kind or "tpu7" in kind) else 1


def _max_tile_rows(kind: str) -> int:
    # v6e/v7x: 32 MiB scoped-VMEM default -> 8192-row (4 MiB f32) blocks.
    # v5e / unknown: stay at 4096 rows (8 MiB double-buffered inputs < 16 MiB).
    if "v6" in kind or "v7" in kind or "tpu7" in kind:
        return 8192
    return 4096


def _sse_kernel(yhat_ref, y_ref, out_ref, acc_ref, *, rows_per_core, tile_rows,
                acc_rows, needs_mask):
    """Per-core partial sum of squared errors over lane-dense tiles."""
    i = pl.program_id(1)                       # step axis (reduction, last)
    last = pl.num_programs(1) - 1

    @pl.when(i == 0)
    def _():
        acc_ref[...] = jnp.zeros_like(acc_ref)

    def accumulate(masked):
        # Static (fully unrolled) chunk loop: every full chunk reuses the same
        # acc rows, so the accumulator can stay vreg-resident across chunks.
        for c0 in range(0, tile_rows, acc_rows):
            rows = min(acc_rows, tile_rows - c0)
            d = (yhat_ref[0, c0:c0 + rows, :].astype(jnp.float32)
                 - y_ref[0, c0:c0 + rows, :].astype(jnp.float32))
            if masked:
                # Zero rows past the valid range of this core (partial final
                # tile).  Mask the diff BEFORE squaring so garbage (inf/nan)
                # in the out-of-bounds region never propagates.
                row = (i * tile_rows + c0
                       + lax.broadcasted_iota(jnp.int32, d.shape, 0))
                d = jnp.where(row < rows_per_core, d, 0.0)
            acc_ref[0, :rows, :] += d * d      # pure elementwise VPU work

    if needs_mask:
        # Only the final step can touch the partial tile -> mask only there.
        @pl.when(i != last)
        def _():
            accumulate(False)

        @pl.when(i == last)
        def _():
            accumulate(True)
    else:
        accumulate(False)

    @pl.when(i == last)
    def _():
        # One small XLU reduction per core, at finalize only (<= 64 KiB).
        out_ref[...] = jnp.sum(acc_ref[...]).reshape(1, 1, 1)


def rmse_loss(yhat, y, eps=1e-6, _tile_rows_cap=None):
    """Pallas equivalent of RMSELoss.forward: sqrt(mean((yhat - y)^2) + eps)."""
    assert yhat.shape == y.shape, "yhat / y must have identical shapes"
    n_elems = int(yhat.size)

    flat_yhat = jnp.ravel(yhat)
    flat_y = jnp.ravel(y)

    kind = _tpu_kind()
    num_cores = _num_cores(kind)

    # Dtype-dependent sublane alignment: 8 rows (f32), 16 (bf16), 32 (int8).
    itemsize = min(jnp.dtype(yhat.dtype).itemsize, jnp.dtype(y.dtype).itemsize)
    sub = max(8, 32 // max(itemsize, 1))

    # Largest aligned prefix the kernel can consume with zero data movement.
    granule = sub * _LANES * num_cores
    rows_per_core = (n_elems // granule) * sub       # multiple of `sub`
    main_elems = rows_per_core * _LANES * num_cores
    tail_elems = n_elems - main_elems                # < granule

    # Tiny unaligned tail handled in plain JAX (no full-array pad copy).
    if tail_elems:
        td = (flat_yhat[main_elems:].astype(jnp.float32)
              - flat_y[main_elems:].astype(jnp.float32))
        tail_sse = jnp.sum(td * td)
    else:
        tail_sse = jnp.float32(0.0)

    if rows_per_core == 0:
        # Input too small for even one aligned tile: pure-JAX fallback.
        mse = tail_sse / jnp.float32(n_elems)
        return jnp.sqrt(mse + jnp.float32(eps))

    if main_elems != n_elems:
        main_yhat = flat_yhat[:main_elems]
        main_y = flat_y[:main_elems]
    else:
        main_yhat, main_y = flat_yhat, flat_y

    yhat3 = main_yhat.reshape(num_cores, rows_per_core, _LANES)
    y3 = main_y.reshape(num_cores, rows_per_core, _LANES)

    max_rows = _tile_rows_cap if _tile_rows_cap is not None else _max_tile_rows(kind)
    max_rows = max(sub, (max_rows // sub) * sub)     # keep sublane-aligned
    if rows_per_core <= max_rows:
        tile_rows = rows_per_core                    # single step, no mask
    else:
        tile_rows = max_rows
    steps = pl.cdiv(rows_per_core, tile_rows)
    needs_mask = (rows_per_core % tile_rows) != 0    # only possible if steps>1
    acc_rows = min(_ACC_ROWS, tile_rows)

    kernel = functools.partial(
        _sse_kernel,
        rows_per_core=rows_per_core,
        tile_rows=tile_rows,
        acc_rows=acc_rows,
        needs_mask=needs_mask,
    )

    in_bytes = main_elems * (jnp.dtype(yhat.dtype).itemsize
                             + jnp.dtype(y.dtype).itemsize)
    cost = pl.CostEstimate(flops=3 * main_elems, transcendentals=0,
                           bytes_accessed=in_bytes + num_cores * 4)

    partial_sse = pl.pallas_call(
        kernel,
        out_shape=jax.ShapeDtypeStruct((num_cores, 1, 1), jnp.float32),
        grid_spec=pltpu.PrefetchScalarGridSpec(
            num_scalar_prefetch=0,
            grid=(num_cores, steps),
            in_specs=[
                pl.BlockSpec((1, tile_rows, _LANES), lambda c, i: (c, i, 0)),
                pl.BlockSpec((1, tile_rows, _LANES), lambda c, i: (c, i, 0)),
            ],
            out_specs=pl.BlockSpec((1, 1, 1), lambda c, i: (c, 0, 0)),
            scratch_shapes=[pltpu.VMEM((1, acc_rows, _LANES), jnp.float32)],
        ),
        compiler_params=pltpu.CompilerParams(
            # "parallel" on the core axis; on v7x verify sharding in xprof and
            # consider pltpu.CORE_PARALLEL if it does not split across TCs.
            dimension_semantics=("parallel", "arbitrary"),
        ),
        cost_estimate=cost,
    )(yhat3, y3)

    mse = (jnp.sum(partial_sse) + tail_sse) / jnp.float32(n_elems)
    return jnp.sqrt(mse + jnp.float32(eps))


def _reference(yhat, y, eps=1e-6):
    d = yhat.astype(jnp.float32) - y.astype(jnp.float32)
    return jnp.sqrt(jnp.mean(d * d) + jnp.float32(eps))


if __name__ == "__main__":
    key = jax.random.PRNGKey(0)

    # 1) Aligned f32 case (kernel fast path, zero copies).
    k1, k2, key = (*jax.random.split(key, 2), key)
    yhat = jax.random.normal(k1, (2, 4, 16, 16), dtype=jnp.float32)
    y = jax.random.normal(k2, (2, 4, 16, 16), dtype=jnp.float32)
    loss = rmse_loss(yhat, y)
    jax.block_until_ready(loss)
    assert jnp.allclose(loss, _reference(yhat, y), rtol=1e-5, atol=1e-6)

    # 2) Multi-step grid with a partial (masked) last tile (small row cap).
    k1, k2, key = (*jax.random.split(key, 2), key)
    yhat2 = jax.random.normal(k1, (3, 32, 32), dtype=jnp.float32)
    y2 = jax.random.normal(k2, (3, 32, 32), dtype=jnp.float32)
    loss2 = rmse_loss(yhat2, y2, _tile_rows_cap=16)
    jax.block_until_ready(loss2)
    assert jnp.allclose(loss2, _reference(yhat2, y2), rtol=1e-5, atol=1e-6)

    # 3) Unaligned element count (aligned prefix in-kernel + plain-JAX tail).
    k1, k2, key = (*jax.random.split(key, 2), key)
    yhat3 = jax.random.normal(k1, (3, 5, 7, 11), dtype=jnp.float32)
    y3 = jax.random.normal(k2, (3, 5, 7, 11), dtype=jnp.float32)
    loss3 = rmse_loss(yhat3, y3)
    jax.block_until_ready(loss3)
    assert jnp.allclose(loss3, _reference(yhat3, y3), rtol=1e-5, atol=1e-6)

    # 4) bf16 inputs (16-row sublane alignment, f32 accumulation in-kernel).
    k1, k2, key = (*jax.random.split(key, 2), key)
    yhat4 = jax.random.normal(k1, (4, 4, 32, 32), dtype=jnp.bfloat16)
    y4 = jax.random.normal(k2, (4, 4, 32, 32), dtype=jnp.bfloat16)
    loss4 = rmse_loss(yhat4, y4)
    jax.block_until_ready(loss4)
    assert jnp.allclose(loss4, _reference(yhat4, y4), rtol=1e-4, atol=1e-5)

    print("KERNEL_OK")
</pallas_src>

<mosaic_0001>
module attributes {stable_mosaic.version = 11 : i64} {
  func.func @_sse_kernel(%arg0: i32, %arg1: i32, %arg2: memref<1x16x128xf32, #tpu.memory_space<vmem>>, %arg3: memref<1x16x128xf32, #tpu.memory_space<vmem>>, %arg4: memref<1x1x1xf32, #tpu.memory_space<vmem>>, %arg5: memref<1x16x128xf32, #tpu.memory_space<vmem>>) attributes {dimension_semantics = [#tpu.dimension_semantics<parallel>, #tpu.dimension_semantics<arbitrary>], iteration_bounds = array<i64: 1, 1>, scalar_prefetch = 0 : i64, scratch_operands = 1 : i64, tpu.core_type = #tpu.core_type<tc>, window_params = [{transform_indices = @transform_0, window_bounds = array<i64: 1, 16, 128>}, {transform_indices = @transform_1, window_bounds = array<i64: 1, 16, 128>}, {transform_indices = @transform_2, window_bounds = array<i64: 1, 1, 1>}]} {
    %c0_i32 = arith.constant 0 : i32
    %0 = arith.cmpi eq, %arg1, %c0_i32 : i32
    %1 = arith.extui %0 : i1 to i32
    %c0_i32_0 = arith.constant 0 : i32
    %2 = arith.cmpi ne, %1, %c0_i32_0 : i32
    scf.if %2 {
      %cst = arith.constant 0.000000e+00 : f32
      %18 = vector.broadcast %cst : f32 to vector<1x16x128xf32>
      %c0_14 = arith.constant 0 : index
      %c0_15 = arith.constant 0 : index
      %c0_16 = arith.constant 0 : index
      %19 = vector.load %arg5[%c0_14, %c0_15, %c0_16] : memref<1x16x128xf32, #tpu.memory_space<vmem>>, vector<1x16x128xf32>
      tpu.vector_store %arg5[%c0_14, %c0_15, %c0_16], %18 {strides = array<i32>} : memref<1x16x128xf32, #tpu.memory_space<vmem>>, vector<1x16x128xf32>,
    } else {
    }
    %c0 = arith.constant 0 : index
    %c0_1 = arith.constant 0 : index
    %c0_2 = arith.constant 0 : index
    %3 = vector.load %arg2[%c0, %c0_1, %c0_2] : memref<1x16x128xf32, #tpu.memory_space<vmem>>, vector<1x16x128xf32>
    %4 = vector.shape_cast %3 : vector<1x16x128xf32> to vector<16x128xf32>
    %c0_3 = arith.constant 0 : index
    %c0_4 = arith.constant 0 : index
    %c0_5 = arith.constant 0 : index
    %5 = vector.load %arg3[%c0_3, %c0_4, %c0_5] : memref<1x16x128xf32, #tpu.memory_space<vmem>>, vector<1x16x128xf32>
    %6 = vector.shape_cast %5 : vector<1x16x128xf32> to vector<16x128xf32>
    %7 = arith.subf %4, %6 : vector<16x128xf32>
    %c0_6 = arith.constant 0 : index
    %c0_7 = arith.constant 0 : index
    %c0_8 = arith.constant 0 : index
    %8 = vector.load %arg5[%c0_6, %c0_7, %c0_8] : memref<1x16x128xf32, #tpu.memory_space<vmem>>, vector<1x16x128xf32>
    %9 = vector.shape_cast %8 : vector<1x16x128xf32> to vector<16x128xf32>
    %10 = arith.mulf %7, %7 : vector<16x128xf32>
    %11 = arith.addf %9, %10 : vector<16x128xf32>
    %c0_9 = arith.constant 0 : index
    %c0_10 = arith.constant 0 : index
    %c0_11 = arith.constant 0 : index
    %12 = vector.load %arg5[%c0_9, %c0_10, %c0_11] : memref<1x16x128xf32, #tpu.memory_space<vmem>>, vector<1x16x128xf32>
    %13 = vector.shape_cast %12 : vector<1x16x128xf32> to vector<16x128xf32>
    %14 = vector.shape_cast %11 : vector<16x128xf32> to vector<1x16x128xf32>
    tpu.vector_store %arg5[%c0_9, %c0_10, %c0_11], %14 {strides = array<i32>} : memref<1x16x128xf32, #tpu.memory_space<vmem>>, vector<1x16x128xf32>,
    %c0_i32_12 = arith.constant 0 : i32
    %15 = arith.cmpi eq, %arg1, %c0_i32_12 : i32
    %16 = arith.extui %15 : i1 to i32
    %c0_i32_13 = arith.constant 0 : i32
    %17 = arith.cmpi ne, %16, %c0_i32_13 : i32
    scf.if %17 {
      %c0_14 = arith.constant 0 : index
      %c0_15 = arith.constant 0 : index
      %c0_16 = arith.constant 0 : index
      %18 = vector.load %arg5[%c0_14, %c0_15, %c0_16] : memref<1x16x128xf32, #tpu.memory_space<vmem>>, vector<1x16x128xf32>
      %19 = vector.shape_cast %18 : vector<1x16x128xf32> to vector<1x1x16x128xf32>
      %cst = arith.constant dense<0.000000e+00> : vector<1xf32>
      %20 = vector.multi_reduction <add>, %19, %cst [1, 2, 3] : vector<1x1x16x128xf32> to vector<1xf32>
      %21 = vector.shape_cast %20 : vector<1xf32> to vector<1x1x1x1xf32>
      %22 = vector.extract %21[0, 0, 0, 0] : f32 from vector<1x1x1x1xf32>
      %23 = vector.broadcast %22 : f32 to vector<1x1x1xf32>
      %c0_17 = arith.constant 0 : index
      %c0_18 = arith.constant 0 : index
      %c0_19 = arith.constant 0 : index
      %24 = vector.load %arg4[%c0_17, %c0_18, %c0_19] : memref<1x1x1xf32, #tpu.memory_space<vmem>>, vector<1x1x1xf32>
      tpu.vector_store %arg4[%c0_17, %c0_18, %c0_19], %23 {strides = array<i32>} : memref<1x1x1xf32, #tpu.memory_space<vmem>>, vector<1x1x1xf32>,
    } else {
    }
    return
  }
  func.func @transform_0(%arg0: i32, %arg1: i32) -> (i32, i32, i32) {
    %c0_i32 = arith.constant 0 : i32
    %c0_i32_0 = arith.constant 0 : i32
    return %arg0, %arg1, %c0_i32 : i32, i32, i32
  }
  func.func @transform_1(%arg0: i32, %arg1: i32) -> (i32, i32, i32) {
    %c0_i32 = arith.constant 0 : i32
    %c0_i32_0 = arith.constant 0 : i32
    return %arg0, %arg1, %c0_i32 : i32, i32, i32
  }
  func.func @transform_2(%arg0: i32, %arg1: i32) -> (i32, i32, i32) {
    %c0_i32 = arith.constant 0 : i32
    %c0_i32_0 = arith.constant 0 : i32
    %c0_i32_1 = arith.constant 0 : i32
    return %arg0, %c0_i32, %c0_i32_0 : i32, i32, i32
  }
}

</mosaic_0001>

<llo_original>
// kernel: tpu_custom_call.1
$region0: #{tpu_custom_call.1}
  #allocation0 [shape = 'u32[]', space=smem, size = 0x4, offset = 0x4, fixed_abs, tag = 'smem constant byte address 0x4 - core index']
  #allocation1 [shape = 'u32[72,128]{1,0:T(1,128)}', space=vmem, size = 0x9000, scoped, tag = 'internal scratch']
  #allocation2 [shape = 'f32[1,16,128]{2,1,0:T(8,128)}', space=vmem, size = 0x2000, scoped, tag = 'scratch operand']
  %s0 = inlined_call_operand.hbm [shape: f32[1,16,128], index: 0, kind: input, shape index: {}]
  %s1 = inlined_call_operand.hbm [shape: f32[1,16,128], index: 1, kind: input, shape index: {}]
  %s2 = inlined_call_operand.hbm [shape: f32[1,1,1], index: 2, kind: output, shape index: {}]
  %s3 = sld [smem:[#allocation0]]
  $region34: #{tpu_custom_call.1} parent=0
    _
  %s5 = ssub.s32 1, %s3
  %s6 = scalar_select 0, %s5, %s3
  $region1: #{tpu_custom_call.1} parent=0
    #allocation3 [shape = 'u8[8192]{0}', space=vmem, size = 0x2000, scoped, tag = 'input window, operand 0, single buffered']
    #allocation4 [shape = 's32[1]{0}', space=sflag, size = 0x4, scoped, tag = 'scoped memory for tpu_custom_call.1']
    #allocation5 [shape = 's32[1]{0}', space=sflag, size = 0x4, scoped, tag = 'scoped memory for tpu_custom_call.1']
    #allocation6 [shape = 'u8[8192]{0}', space=vmem, size = 0x2000, scoped, tag = 'input window, operand 1, single buffered']
    #allocation7 [shape = 's32[1]{0}', space=sflag, size = 0x4, scoped, tag = 'scoped memory for tpu_custom_call.1']
    #allocation8 [shape = 'u8[512]{0}', space=vmem, size = 0x400, scoped, tag = 'output window, operand 0, single buffered']
    %7 = vsyncpa [#allocation4], 0
    %8 = vsyncpa [#allocation7], 0
    %9 = vsyncpa [#allocation5], 0
    // Predicated region
    $region2: #{tpu_custom_call.1} parent=1 // pred_check
      _
    $region3: #{tpu_custom_call.1} parent=1 // pred_check_branch
      %11 = sbr.rel (0) target = $region5
    $region4: #{tpu_custom_call.1} parent=1 // pred_region
      %13 = vsyncadd [#allocation4], 0
      %s14 = sshll.u32 %s0, 4
      %s15 = int_to_ptr.hbm [resolvable:$true] %s14
      %s16 = sshll.u32 [#allocation3], 4
      %s17 = int_to_ptr.vmem [resolvable:$true] %s16
      %22 = dma.hbm_to_vmem [thread:$0]  %s15, 256, %s17, [#allocation4], 128, 128, 8
    $region5: #{tpu_custom_call.1} parent=1 // pred_fallthru
      _
    // Predicated region
    $region6: #{tpu_custom_call.1} parent=1 // pred_check
      _
    $region7: #{tpu_custom_call.1} parent=1 // pred_check_branch
      %24 = sbr.rel (0) target = $region9
    $region8: #{tpu_custom_call.1} parent=1 // pred_region
      %26 = vsyncadd [#allocation7], 0
      %s27 = sshll.u32 %s1, 4
      %s28 = int_to_ptr.hbm [resolvable:$true] %s27
      %s29 = sshll.u32 [#allocation6], 4
      %s30 = int_to_ptr.vmem [resolvable:$true] %s29
      %35 = dma.hbm_to_vmem [thread:$0]  %s28, 256, %s30, [#allocation7], 128, 128, 8
    $region9: #{tpu_custom_call.1} parent=1 // pred_fallthru
      _
    // Predicated region
    $region10: #{tpu_custom_call.1} parent=1 // pred_check
      _
    $region11: #{tpu_custom_call.1} parent=1 // pred_check_branch
      %37 = sbr.rel (0) target = $region13
    $region12: #{tpu_custom_call.1} parent=1 // pred_region
      %39 = dma.done [#allocation4], 256
    $region13: #{tpu_custom_call.1} parent=1 // pred_fallthru
      _
    // Predicated region
    $region14: #{tpu_custom_call.1} parent=1 // pred_check
      _
    $region15: #{tpu_custom_call.1} parent=1 // pred_check_branch
      %41 = sbr.rel (0) target = $region17
    $region16: #{tpu_custom_call.1} parent=1 // pred_region
      %43 = dma.done [#allocation7], 256
    $region17: #{tpu_custom_call.1} parent=1 // pred_fallthru
      _
    %p44 = scmp.eq.s32.totalorder 0, 0
    // Predicated region
    $region18: #{tpu_custom_call.1} parent=1 // pred_check
      %p45 = pneg %p44
    $region19: #{tpu_custom_call.1} parent=1 // pred_check_branch
      %47 = sbr.rel (%p45) target = $region21
    $region20: #{tpu_custom_call.1} parent=1 // pred_region
      %48 = vst [vmem:[#allocation2] sm:$0xff] 0.0
      %49 = vst [vmem:[#allocation2 + $0x8] sm:$0xff] 0.0
    $region21: #{tpu_custom_call.1} parent=1 // pred_fallthru
      _
    %v50 = vld [vmem:[#allocation3] sm:$0xff]
    %v51 = vld [vmem:[#allocation3 + $0x8] sm:$0xff]
    %v52 = vld [vmem:[#allocation6] sm:$0xff]
    %v53 = vld [vmem:[#allocation6 + $0x8] sm:$0xff]
    %v54 = vsub.f32 %v50, %v52
    %v55 = vsub.f32 %v51, %v53
    %v56 = vld [vmem:[#allocation2] sm:$0xff]
    %v57 = vld [vmem:[#allocation2 + $0x8] sm:$0xff]
    %v58 = vmul.f32 %v54, %v54
    %v59 = vmul.f32 %v55, %v55
    %v60 = vadd.f32 %v56, %v58
    %v61 = vadd.f32 %v57, %v59
    %62 = vst [vmem:[#allocation2] sm:$0xff] %v60
    %63 = vst [vmem:[#allocation2 + $0x8] sm:$0xff] %v61
    // Predicated region
    $region22: #{tpu_custom_call.1} parent=1 // pred_check
      %p64 = pneg %p44
    $region23: #{tpu_custom_call.1} parent=1 // pred_check_branch
      %66 = sbr.rel (%p64) target = $region25
    $region24: #{tpu_custom_call.1} parent=1 // pred_region
      %v67 = vld [vmem:[#allocation2] sm:$0xff]
      %v68 = vld [vmem:[#allocation2 + $0x8] sm:$0xff]
      %v69 = vadd.f32 %v67, %v68
      %70 = vadd.xlane.f32.xlu0 %v69
      %v71 = vpop.xlane.xlu0 %70
      %v72 = vrot.slane %v71, 4
      %v73 = vadd.f32 %v71, %v72
      %v74 = vrot.slane %v73, 2
      %v75 = vadd.f32 %v73, %v74
      %v76 = vrot.slane %v75, 1
      %v77 = vadd.f32 %v75, %v76
      %s78 = vtos %v77
      %v79 = vstv %s78
      %vm80 = vcmask 0
      %81 = vst.msk [vmem:[#allocation8] sm:$0x1] %vm80, %v79
    $region25: #{tpu_custom_call.1} parent=1 // pred_fallthru
      _
    // Predicated region
    $region26: #{tpu_custom_call.1} parent=1 // pred_check
      _
    $region27: #{tpu_custom_call.1} parent=1 // pred_check_branch
      %83 = sbr.rel (0) target = $region29
    $region28: #{tpu_custom_call.1} parent=1 // pred_region
      %85 = vsyncadd [#allocation5], 0
      %s87 = sshll.u32 [#allocation8], 4
      %s88 = int_to_ptr.vmem [resolvable:$true] %s87
      %s89 = sshll.u32 %s2, 4
      %s90 = int_to_ptr.hbm [resolvable:$true] %s89
      %92 = dma.vmem_to_hbm [thread:$0]  %s88, 16, %s90, [#allocation5]
    $region29: #{tpu_custom_call.1} parent=1 // pred_fallthru
      _
    // Predicated region
    $region30: #{tpu_custom_call.1} parent=1 // pred_check
      _
    $region31: #{tpu_custom_call.1} parent=1 // pred_check_branch
      %94 = sbr.rel (0) target = $region33
    $region32: #{tpu_custom_call.1} parent=1 // pred_region
      %96 = dma.done [#allocation5], 16
    $region33: #{tpu_custom_call.1} parent=1 // pred_fallthru
      _
    %97 = vsyncpa [#allocation4], 1
    %98 = vsyncpa [#allocation7], 1
    %99 = vsyncpa [#allocation5], 1

</llo_original>
